<compile_context>
chip_gen: v5e
topology: v5e:2x2
jax: 0.10.0
libtpu: 0.0.40
codegen_flags: <defaults>
</compile_context>

<pallas_src>
import jax
import jax.numpy as jnp
from jax.experimental import pallas as pl
from jax.experimental.pallas import tpu as pltpu


# ----------------------------- kernels -------------------------------------


def vae_kernel_identity_mu(bmu_ref, w1_t_ref, b1_ref, w2_ref, b2_ref,
                           x_ref, eps_ref, z_out, mu_out, lv_out):
    x = x_ref[...]                                                   # (bm, D)

    # mu branch: W_mu is the identity -> pure VPU add, no MXU work.
    mu = x + bmu_ref[...]

    # logvar branch: Linear(D, D) -> Sigmoid -> Linear(D, 1)
    h_pre = jnp.dot(x, w1_t_ref[...], preferred_element_type=jnp.float32) + b1_ref[...]
    h = 0.5 * (jnp.tanh(0.5 * h_pre) + 1.0)                          # sigmoid, single EUP push
    # (D -> 1) head as VPU multiply + XLU cross-lane reduce (no 1-column matmul).
    logvar = jnp.sum(h * w2_ref[...], axis=-1, keepdims=True) + b2_ref[0]   # (bm, 1)

    # reparameterize: z = mu + eps * exp(0.5 * logvar)
    z = mu + eps_ref[...] * jnp.exp(0.5 * logvar)

    z_out[...] = z
    mu_out[...] = mu
    lv_out[...] = logvar


def vae_kernel_general_mu(wmu_t_ref, bmu_ref, w1_t_ref, b1_ref, w2_ref, b2_ref,
                          x_ref, eps_ref, z_out, mu_out, lv_out):
    x = x_ref[...]                                                   # (bm, D)

    # mu branch: general (trained / non-identity) weight -> keep the matmul.
    mu = jnp.dot(x, wmu_t_ref[...], preferred_element_type=jnp.float32) + bmu_ref[...]

    h_pre = jnp.dot(x, w1_t_ref[...], preferred_element_type=jnp.float32) + b1_ref[...]
    h = 0.5 * (jnp.tanh(0.5 * h_pre) + 1.0)
    logvar = jnp.sum(h * w2_ref[...], axis=-1, keepdims=True) + b2_ref[0]

    z = mu + eps_ref[...] * jnp.exp(0.5 * logvar)

    z_out[...] = z
    mu_out[...] = mu
    lv_out[...] = logvar


# ----------------------------- wrapper --------------------------------------


def _round_up(n, m):
    return ((n + m - 1) // m) * m


def vae_forward(x, params, eps, *, block_rows=512, wmu_is_identity=True):
    """VAELayer forward via a batch-tiled Pallas TPU kernel.

    wmu_is_identity=True exploits the module's identity init for W_mu (no matmul);
    set False to use the general kernel with an arbitrary W_mu.
    """
    N, D = x.shape
    x = x.astype(jnp.float32)
    eps = eps.astype(jnp.float32)

    # Batch tile: multiple of 8 sublanes, capped at block_rows; pad N up to a tile.
    bm = min(block_rows, _round_up(N, 8))
    n_pad = _round_up(N, bm)
    if n_pad != N:
        pad = ((0, n_pad - N), (0, 0))
        x = jnp.pad(x, pad)
        eps = jnp.pad(eps, pad)
    grid = (n_pad // bm,)

    # Parameters, pre-transposed so the kernel does plain x @ W.
    bmu = params["bmu"].reshape(1, D).astype(jnp.float32)
    w1_t = params["w1"].T.astype(jnp.float32)            # (D, D)
    b1 = params["b1"].reshape(1, D).astype(jnp.float32)
    w2_row = params["w2"].reshape(1, D).astype(jnp.float32)
    b2 = params["b2"].reshape(1,).astype(jnp.float32)    # scalar, lives in SMEM

    # Block specs: batch-tiled activations, resident weights (constant index_map).
    row_spec = pl.BlockSpec((bm, D), lambda i: (i, 0))
    lv_spec = pl.BlockSpec((bm, 1), lambda i: (i, 0))
    vec_spec = pl.BlockSpec((1, D), lambda i: (0, 0))
    mat_spec = pl.BlockSpec((D, D), lambda i: (0, 0))
    smem_spec = pl.BlockSpec(memory_space=pltpu.MemorySpace.SMEM)

    out_shapes = (
        jax.ShapeDtypeStruct((n_pad, D), jnp.float32),   # z
        jax.ShapeDtypeStruct((n_pad, D), jnp.float32),   # mu
        jax.ShapeDtypeStruct((n_pad, 1), jnp.float32),   # logvar
    )
    compiler_params = pltpu.CompilerParams(
        dimension_semantics=("parallel",),               # v7x: shard batch across both TCs
        vmem_limit_bytes=32 * 1024 * 1024,               # explicit; safe on v5e/v6e/v7x
    )

    if wmu_is_identity:
        kernel = vae_kernel_identity_mu
        in_specs = [vec_spec, mat_spec, vec_spec, vec_spec, smem_spec, row_spec, row_spec]
        args = (bmu, w1_t, b1, w2_row, b2, x, eps)
    else:
        kernel = vae_kernel_general_mu
        wmu_t = params["wmu"].T.astype(jnp.float32)
        in_specs = [mat_spec, vec_spec, mat_spec, vec_spec, vec_spec, smem_spec,
                    row_spec, row_spec]
        args = (wmu_t, bmu, w1_t, b1, w2_row, b2, x, eps)

    z, mu, logvar = pl.pallas_call(
        kernel,
        out_shape=out_shapes,
        grid=grid,
        in_specs=in_specs,
        out_specs=(row_spec, row_spec, lv_spec),
        compiler_params=compiler_params,
    )(*args)

    if n_pad != N:
        z, mu, logvar = z[:N], mu[:N], logvar[:N]
    return z, mu, logvar


# ----------------------------- reference & init ------------------------------


def init_params(key, data_dim):
    """Deterministic parameter init mirroring the PyTorch __init__ semantics."""
    k_bmu, k_w1, k_b1, k_w2 = jax.random.split(key, 4)
    bound = 1.0 / jnp.sqrt(jnp.asarray(data_dim, jnp.float32))
    return {
        # VariationalMean: weight overridden to identity; bias keeps default uniform init.
        "wmu": jnp.eye(data_dim, dtype=jnp.float32),
        "bmu": jax.random.uniform(k_bmu, (data_dim,), jnp.float32, -bound, bound),
        # VariationalVar.linear1: weight ~ N(0, 1/sqrt(D)), bias default uniform.
        "w1": bound * jax.random.normal(k_w1, (data_dim, data_dim), jnp.float32),
        "b1": jax.random.uniform(k_b1, (data_dim,), jnp.float32, -bound, bound),
        # VariationalVar.linear2 (D -> 1): weight ~ N(0, 1/sqrt(D)), bias constant -2.
        "w2": bound * jax.random.normal(k_w2, (1, data_dim), jnp.float32),
        "b2": jnp.full((1,), -2.0, dtype=jnp.float32),
    }


def vae_forward_ref(x, params, eps):
    mu = x @ params["wmu"].T + params["bmu"]
    h = jax.nn.sigmoid(x @ params["w1"].T + params["b1"])
    logvar = h @ params["w2"].T + params["b2"]
    z = mu + eps * jnp.exp(0.5 * logvar)
    return z, mu, logvar


# ----------------------------- test harness ----------------------------------


if __name__ == "__main__":
    key = jax.random.PRNGKey(0)
    k_param, k_x, k_eps, k_x2, k_eps2 = jax.random.split(key, 5)

    data_dim = 32
    batch = 8

    params = init_params(k_param, data_dim)
    x = jax.random.normal(k_x, (batch, data_dim), jnp.float32)
    eps = jax.random.normal(k_eps, (batch, data_dim), jnp.float32)

    # 1) fast path: identity W_mu folded away.
    z, mu, logvar = vae_forward(x, params, eps, wmu_is_identity=True)
    jax.block_until_ready((z, mu, logvar))
    z_r, mu_r, lv_r = vae_forward_ref(x, params, eps)
    assert z.shape == (batch, data_dim) and mu.shape == (batch, data_dim)
    assert logvar.shape == (batch, 1)
    assert jnp.allclose(z, z_r, atol=1e-5, rtol=1e-5)
    assert jnp.allclose(mu, mu_r, atol=1e-5, rtol=1e-5)
    assert jnp.allclose(logvar, lv_r, atol=1e-5, rtol=1e-5)

    # 2) general path: explicit W_mu matmul (same result at identity init).
    z_g, mu_g, lv_g = vae_forward(x, params, eps, wmu_is_identity=False)
    jax.block_until_ready((z_g, mu_g, lv_g))
    assert jnp.allclose(z_g, z_r, atol=1e-5, rtol=1e-5)
    assert jnp.allclose(mu_g, mu_r, atol=1e-5, rtol=1e-5)
    assert jnp.allclose(lv_g, lv_r, atol=1e-5, rtol=1e-5)

    # 3) ragged batch (exercises the padding + tiling path).
    batch2 = 10
    x2 = jax.random.normal(k_x2, (batch2, data_dim), jnp.float32)
    eps2 = jax.random.normal(k_eps2, (batch2, data_dim), jnp.float32)
    z2, mu2, lv2 = vae_forward(x2, params, eps2, wmu_is_identity=True)
    jax.block_until_ready((z2, mu2, lv2))
    z2_r, mu2_r, lv2_r = vae_forward_ref(x2, params, eps2)
    assert z2.shape == (batch2, data_dim) and lv2.shape == (batch2, 1)
    assert jnp.allclose(z2, z2_r, atol=1e-5, rtol=1e-5)
    assert jnp.allclose(mu2, mu2_r, atol=1e-5, rtol=1e-5)
    assert jnp.allclose(lv2, lv2_r, atol=1e-5, rtol=1e-5)

    print("KERNEL_OK")
</pallas_src>

<mosaic_0001>
module attributes {stable_mosaic.version = 11 : i64} {
  func.func @vae_kernel_identity_mu(%arg0: i32, %arg1: memref<1x32xf32, #tpu.memory_space<vmem>>, %arg2: memref<32x32xf32, #tpu.memory_space<vmem>>, %arg3: memref<1x32xf32, #tpu.memory_space<vmem>>, %arg4: memref<1x32xf32, #tpu.memory_space<vmem>>, %arg5: memref<1xf32, #tpu.memory_space<smem>>, %arg6: memref<8x32xf32, #tpu.memory_space<vmem>>, %arg7: memref<8x32xf32, #tpu.memory_space<vmem>>, %arg8: memref<8x32xf32, #tpu.memory_space<vmem>>, %arg9: memref<8x32xf32, #tpu.memory_space<vmem>>, %arg10: memref<8x1xf32, #tpu.memory_space<vmem>>) attributes {dimension_semantics = [#tpu.dimension_semantics<parallel>], iteration_bounds = array<i64: 1>, scalar_prefetch = 0 : i64, scratch_operands = 0 : i64, tpu.core_type = #tpu.core_type<tc>, window_params = [{pipeline_mode = #tpu.pipeline_mode<synchronous>, transform_indices = @transform_0, window_bounds = array<i64: 1, 32>}, {pipeline_mode = #tpu.pipeline_mode<synchronous>, transform_indices = @transform_1, window_bounds = array<i64: 32, 32>}, {pipeline_mode = #tpu.pipeline_mode<synchronous>, transform_indices = @transform_2, window_bounds = array<i64: 1, 32>}, {pipeline_mode = #tpu.pipeline_mode<synchronous>, transform_indices = @transform_3, window_bounds = array<i64: 1, 32>}, {transform_indices = @transform_4, window_bounds = array<i64: 1>}, {transform_indices = @transform_5, window_bounds = array<i64: 8, 32>}, {transform_indices = @transform_6, window_bounds = array<i64: 8, 32>}, {transform_indices = @transform_7, window_bounds = array<i64: 8, 32>}, {transform_indices = @transform_8, window_bounds = array<i64: 8, 32>}, {transform_indices = @transform_9, window_bounds = array<i64: 8, 1>}]} {
    %c0 = arith.constant 0 : index
    %c0_0 = arith.constant 0 : index
    %0 = vector.load %arg6[%c0, %c0_0] : memref<8x32xf32, #tpu.memory_space<vmem>>, vector<8x32xf32>
    %c0_1 = arith.constant 0 : index
    %c0_2 = arith.constant 0 : index
    %1 = vector.load %arg1[%c0_1, %c0_2] : memref<1x32xf32, #tpu.memory_space<vmem>>, vector<1x32xf32>
    %2 = vector.broadcast %1 : vector<1x32xf32> to vector<8x32xf32>
    %3 = arith.addf %0, %2 : vector<8x32xf32>
    %c0_3 = arith.constant 0 : index
    %c0_4 = arith.constant 0 : index
    %4 = vector.load %arg2[%c0_3, %c0_4] : memref<32x32xf32, #tpu.memory_space<vmem>>, vector<32x32xf32>
    %cst = arith.constant dense<0.000000e+00> : vector<8x32xf32>
    %5 = tpu.matmul %0, %4, %cst {dimension_numbers = #tpu.dot_dimension_numbers<[1], [0], [0], [1], [0, 0, 1, 1], [], []>} : vector<8x32xf32>, vector<32x32xf32>, vector<8x32xf32> -> vector<8x32xf32>
    %c0_5 = arith.constant 0 : index
    %c0_6 = arith.constant 0 : index
    %6 = vector.load %arg3[%c0_5, %c0_6] : memref<1x32xf32, #tpu.memory_space<vmem>>, vector<1x32xf32>
    %7 = vector.broadcast %6 : vector<1x32xf32> to vector<8x32xf32>
    %8 = arith.addf %5, %7 : vector<8x32xf32>
    %cst_7 = arith.constant 5.000000e-01 : f32
    %9 = vector.broadcast %cst_7 : f32 to vector<8x32xf32>
    %10 = arith.mulf %9, %8 : vector<8x32xf32>
    %11 = math.tanh %10 : vector<8x32xf32>
    %cst_8 = arith.constant 1.000000e+00 : f32
    %12 = vector.broadcast %cst_8 : f32 to vector<8x32xf32>
    %13 = arith.addf %11, %12 : vector<8x32xf32>
    %cst_9 = arith.constant 5.000000e-01 : f32
    %14 = vector.broadcast %cst_9 : f32 to vector<8x32xf32>
    %15 = arith.mulf %14, %13 : vector<8x32xf32>
    %c0_10 = arith.constant 0 : index
    %c0_11 = arith.constant 0 : index
    %16 = vector.load %arg4[%c0_10, %c0_11] : memref<1x32xf32, #tpu.memory_space<vmem>>, vector<1x32xf32>
    %17 = vector.broadcast %16 : vector<1x32xf32> to vector<8x32xf32>
    %18 = arith.mulf %15, %17 : vector<8x32xf32>
    %cst_12 = arith.constant dense<0.000000e+00> : vector<8xf32>
    %19 = vector.multi_reduction <add>, %18, %cst_12 [1] : vector<8x32xf32> to vector<8xf32>
    %20 = vector.shape_cast %19 : vector<8xf32> to vector<8x1xf32>
    %c0_13 = arith.constant 0 : index
    %21 = memref.load %arg5[%c0_13] : memref<1xf32, #tpu.memory_space<smem>>
    %22 = vector.broadcast %21 : f32 to vector<8x1xf32>
    %23 = arith.addf %20, %22 : vector<8x1xf32>
    %c0_14 = arith.constant 0 : index
    %c0_15 = arith.constant 0 : index
    %24 = vector.load %arg7[%c0_14, %c0_15] : memref<8x32xf32, #tpu.memory_space<vmem>>, vector<8x32xf32>
    %cst_16 = arith.constant 5.000000e-01 : f32
    %25 = vector.broadcast %cst_16 : f32 to vector<8x1xf32>
    %26 = arith.mulf %25, %23 : vector<8x1xf32>
    %27 = math.exp %26 : vector<8x1xf32>
    %28 = vector.broadcast %27 : vector<8x1xf32> to vector<8x32xf32>
    %29 = arith.mulf %24, %28 : vector<8x32xf32>
    %30 = arith.addf %3, %29 : vector<8x32xf32>
    %c0_17 = arith.constant 0 : index
    %c0_18 = arith.constant 0 : index
    %31 = vector.load %arg8[%c0_17, %c0_18] : memref<8x32xf32, #tpu.memory_space<vmem>>, vector<8x32xf32>
    tpu.vector_store %arg8[%c0_17, %c0_18], %30 {strides = array<i32>} : memref<8x32xf32, #tpu.memory_space<vmem>>, vector<8x32xf32>,
    %c0_19 = arith.constant 0 : index
    %c0_20 = arith.constant 0 : index
    %32 = vector.load %arg9[%c0_19, %c0_20] : memref<8x32xf32, #tpu.memory_space<vmem>>, vector<8x32xf32>
    tpu.vector_store %arg9[%c0_19, %c0_20], %3 {strides = array<i32>} : memref<8x32xf32, #tpu.memory_space<vmem>>, vector<8x32xf32>,
    %c0_21 = arith.constant 0 : index
    %c0_22 = arith.constant 0 : index
    %33 = vector.load %arg10[%c0_21, %c0_22] : memref<8x1xf32, #tpu.memory_space<vmem>>, vector<8x1xf32>
    tpu.vector_store %arg10[%c0_21, %c0_22], %23 {strides = array<i32>} : memref<8x1xf32, #tpu.memory_space<vmem>>, vector<8x1xf32>,
    return
  }
  func.func @transform_0(%arg0: i32) -> (i32, i32) {
    %c0_i32 = arith.constant 0 : i32
    %c0_i32_0 = arith.constant 0 : i32
    %c0_i32_1 = arith.constant 0 : i32
    return %c0_i32, %c0_i32_0 : i32, i32
  }
  func.func @transform_1(%arg0: i32) -> (i32, i32) {
    %c0_i32 = arith.constant 0 : i32
    %c0_i32_0 = arith.constant 0 : i32
    %c0_i32_1 = arith.constant 0 : i32
    return %c0_i32, %c0_i32_0 : i32, i32
  }
  func.func @transform_2(%arg0: i32) -> (i32, i32) {
    %c0_i32 = arith.constant 0 : i32
    %c0_i32_0 = arith.constant 0 : i32
    %c0_i32_1 = arith.constant 0 : i32
    return %c0_i32, %c0_i32_0 : i32, i32
  }
  func.func @transform_3(%arg0: i32) -> (i32, i32) {
    %c0_i32 = arith.constant 0 : i32
    %c0_i32_0 = arith.constant 0 : i32
    %c0_i32_1 = arith.constant 0 : i32
    return %c0_i32, %c0_i32_0 : i32, i32
  }
  func.func @transform_4(%arg0: i32) -> i32 {
    %c0_i32 = arith.constant 0 : i32
    %c0_i32_0 = arith.constant 0 : i32
    return %c0_i32 : i32
  }
  func.func @transform_5(%arg0: i32) -> (i32, i32) {
    %c0_i32 = arith.constant 0 : i32
    %c0_i32_0 = arith.constant 0 : i32
    return %arg0, %c0_i32 : i32, i32
  }
  func.func @transform_6(%arg0: i32) -> (i32, i32) {
    %c0_i32 = arith.constant 0 : i32
    %c0_i32_0 = arith.constant 0 : i32
    return %arg0, %c0_i32 : i32, i32
  }
  func.func @transform_7(%arg0: i32) -> (i32, i32) {
    %c0_i32 = arith.constant 0 : i32
    %c0_i32_0 = arith.constant 0 : i32
    return %arg0, %c0_i32 : i32, i32
  }
  func.func @transform_8(%arg0: i32) -> (i32, i32) {
    %c0_i32 = arith.constant 0 : i32
    %c0_i32_0 = arith.constant 0 : i32
    return %arg0, %c0_i32 : i32, i32
  }
  func.func @transform_9(%arg0: i32) -> (i32, i32) {
    %c0_i32 = arith.constant 0 : i32
    %c0_i32_0 = arith.constant 0 : i32
    return %arg0, %c0_i32 : i32, i32
  }
}

</mosaic_0001>

<llo_original>
// kernel: tpu_custom_call.1
$region0: #{tpu_custom_call.1}
  #allocation0 [shape = 'u32[]', space=smem, size = 0x4, offset = 0x4, fixed_abs, tag = 'smem constant byte address 0x4 - core index']
  #allocation1 [shape = 'u32[72,128]{1,0:T(1,128)}', space=vmem, size = 0x9000, scoped, tag = 'internal scratch']
  #allocation2 [shape = 'f32[1]{0:T(128)S(6)}', space=smem, size = 0x200, scoped, tag = 'scoped memory for tpu_custom_call.1']
  %s0 = inlined_call_operand.vmem [shape: f32[1,32], index: 0, kind: input, shape index: {}]
  %s1 = inlined_call_operand.hbm [shape: f32[32,32], index: 1, kind: input, shape index: {}]
  %s2 = inlined_call_operand.vmem [shape: f32[1,32], index: 2, kind: input, shape index: {}]
  %s3 = inlined_call_operand.vmem [shape: f32[1,32], index: 3, kind: input, shape index: {}]
  %s4 = inlined_call_operand.<no memory space> [shape: f32[1], index: 4, kind: input, shape index: {}]
  %s5 = inlined_call_operand.hbm [shape: f32[8,32], index: 5, kind: input, shape index: {}]
  %s6 = inlined_call_operand.hbm [shape: f32[8,32], index: 6, kind: input, shape index: {}]
  %s7 = inlined_call_operand.hbm [shape: f32[8,32], index: 7, kind: output, shape index: {0}]
  %s8 = inlined_call_operand.hbm [shape: f32[8,32], index: 8, kind: output, shape index: {1}]
  %s9 = inlined_call_operand.vmem [shape: f32[8,1], index: 9, kind: output, shape index: {2}]
  %10 = xla_tuple %s7, %s8, %s9
  %s11 = sld [smem:[#allocation0]]
  $region66: #{tpu_custom_call.1} parent=0
    _
  %s13 = ssub.s32 1, %s11
  %s14 = scalar_select 0, %s13, %s11
  %15 = sst [smem:[#allocation2]] %s4
  $region1: #{tpu_custom_call.1} parent=0
    #allocation3 [shape = 'u8[16384]{0}', space=vmem, size = 0x4000, scoped, tag = 'input window, operand 1, single buffered']
    #allocation4 [shape = 's32[1]{0}', space=sflag, size = 0x4, scoped, tag = 'scoped memory for tpu_custom_call.1']
    #allocation5 [shape = 's32[1]{0}', space=sflag, size = 0x4, scoped, tag = 'scoped memory for tpu_custom_call.1']
    #allocation6 [shape = 'u8[4096]{0}', space=vmem, size = 0x1000, scoped, tag = 'input window, operand 5, single buffered']
    #allocation7 [shape = 's32[1]{0}', space=sflag, size = 0x4, scoped, tag = 'scoped memory for tpu_custom_call.1']
    #allocation8 [shape = 'u8[4096]{0}', space=vmem, size = 0x1000, scoped, tag = 'input window, operand 6, single buffered']
    #allocation9 [shape = 'u8[4096]{0}', space=vmem, size = 0x1000, scoped, tag = 'output window, operand 0, single buffered']
    #allocation10 [shape = 'u8[4096]{0}', space=vmem, size = 0x1000, scoped, tag = 'output window, operand 1, single buffered']
    #allocation11 [shape = 's32[1]{0}', space=sflag, size = 0x4, scoped, tag = 'scoped memory for tpu_custom_call.1']
    %16 = vsyncpa [#allocation4], 0
    %17 = vsyncpa [#allocation7], 0
    %18 = vsyncpa [#allocation5], 0
    %19 = vsyncpa [#allocation11], 0
    // Predicated region
    $region2: #{tpu_custom_call.1} parent=1 // pred_check
      _
    $region3: #{tpu_custom_call.1} parent=1 // pred_check_branch
      %21 = sbr.rel (0) target = $region5
    $region4: #{tpu_custom_call.1} parent=1 // pred_region
      _
    $region5: #{tpu_custom_call.1} parent=1 // pred_fallthru
      _
    // Predicated region
    $region6: #{tpu_custom_call.1} parent=1 // pred_check
      _
    $region7: #{tpu_custom_call.1} parent=1 // pred_check_branch
      %23 = sbr.rel (0) target = $region9
    $region8: #{tpu_custom_call.1} parent=1 // pred_region
      %25 = vsyncadd [#allocation4], 0
      %s26 = sshll.u32 %s1, 4
      %s27 = int_to_ptr.hbm [resolvable:$true] %s26
      %s28 = sshll.u32 [#allocation3], 4
      %s29 = int_to_ptr.vmem [resolvable:$true] %s28
      %34 = dma.hbm_to_vmem [thread:$0]  %s27, 512, %s29, [#allocation4], 128, 128, 8
    $region9: #{tpu_custom_call.1} parent=1 // pred_fallthru
      _
    // Predicated region
    $region10: #{tpu_custom_call.1} parent=1 // pred_check
      _
    $region11: #{tpu_custom_call.1} parent=1 // pred_check_branch
      %36 = sbr.rel (0) target = $region13
    $region12: #{tpu_custom_call.1} parent=1 // pred_region
      _
    $region13: #{tpu_custom_call.1} parent=1 // pred_fallthru
      _
    // Predicated region
    $region14: #{tpu_custom_call.1} parent=1 // pred_check
      _
    $region15: #{tpu_custom_call.1} parent=1 // pred_check_branch
      %38 = sbr.rel (0) target = $region17
    $region16: #{tpu_custom_call.1} parent=1 // pred_region
      _
    $region17: #{tpu_custom_call.1} parent=1 // pred_fallthru
      _
    // Predicated region
    $region18: #{tpu_custom_call.1} parent=1 // pred_check
      _
    $region19: #{tpu_custom_call.1} parent=1 // pred_check_branch
      %40 = sbr.rel (0) target = $region21
    $region20: #{tpu_custom_call.1} parent=1 // pred_region
      _
    $region21: #{tpu_custom_call.1} parent=1 // pred_fallthru
      _
    // Predicated region
    $region22: #{tpu_custom_call.1} parent=1 // pred_check
      _
    $region23: #{tpu_custom_call.1} parent=1 // pred_check_branch
      %42 = sbr.rel (0) target = $region25
    $region24: #{tpu_custom_call.1} parent=1 // pred_region
      %44 = vsyncadd [#allocation7], 0
      %s46 = sshll.u32 %s5, 4
      %s47 = int_to_ptr.hbm [resolvable:$true] %s46
      %s48 = sshll.u32 [#allocation6], 4
      %s49 = int_to_ptr.vmem [resolvable:$true] %s48
      %51 = dma.hbm_to_vmem [thread:$0]  %s47, 128, %s49, [#allocation7]
    $region25: #{tpu_custom_call.1} parent=1 // pred_fallthru
      _
    // Predicated region
    $region26: #{tpu_custom_call.1} parent=1 // pred_check
      _
    $region27: #{tpu_custom_call.1} parent=1 // pred_check_branch
      %53 = sbr.rel (0) target = $region29
    $region28: #{tpu_custom_call.1} parent=1 // pred_region
      %55 = vsyncadd [#allocation7], 0
      %s57 = sshll.u32 %s6, 4
      %s58 = int_to_ptr.hbm [resolvable:$true] %s57
      %s59 = sshll.u32 [#allocation8], 4
      %s60 = int_to_ptr.vmem [resolvable:$true] %s59
      %62 = dma.hbm_to_vmem [thread:$0]  %s58, 128, %s60, [#allocation7]
    $region29: #{tpu_custom_call.1} parent=1 // pred_fallthru
      _
    // Predicated region
    $region30: #{tpu_custom_call.1} parent=1 // pred_check
      _
    $region31: #{tpu_custom_call.1} parent=1 // pred_check_branch
      %64 = sbr.rel (0) target = $region33
    $region32: #{tpu_custom_call.1} parent=1 // pred_region
      %66 = dma.done [#allocation4], 512
    $region33: #{tpu_custom_call.1} parent=1 // pred_fallthru
      _
    // Predicated region
    $region34: #{tpu_custom_call.1} parent=1 // pred_check
      _
    $region35: #{tpu_custom_call.1} parent=1 // pred_check_branch
      %68 = sbr.rel (0) target = $region37
    $region36: #{tpu_custom_call.1} parent=1 // pred_region
      %70 = dma.done [#allocation7], 128
    $region37: #{tpu_custom_call.1} parent=1 // pred_fallthru
      _
    // Predicated region
    $region38: #{tpu_custom_call.1} parent=1 // pred_check
      _
    $region39: #{tpu_custom_call.1} parent=1 // pred_check_branch
      %72 = sbr.rel (0) target = $region41
    $region40: #{tpu_custom_call.1} parent=1 // pred_region
      %74 = dma.done [#allocation7], 128
    $region41: #{tpu_custom_call.1} parent=1 // pred_fallthru
      _
    %v75 = vld [vmem:[#allocation6] sm:$0xff]
    %v76 = vld [vmem:[%s0] sm:$0x1]
    %v78 = vperm.slane %v76, 0
    %v80 = vadd.f32 %v75, %v78
    %v81 = vld [vmem:[#allocation3] sm:$0xff]
    %v82 = vld [vmem:[#allocation3 + $0x8] sm:$0xff]
    %v83 = vld [vmem:[#allocation3 + $0x10] sm:$0xff]
    %v84 = vld [vmem:[#allocation3 + $0x18] sm:$0xff]
    %v85 = vld [vmem:[%s2] sm:$0x1]
    %v87 = vperm.slane %v85, 0
    %vm89 = vcmask 261120
    %v91 = vsel %vm89, %v75, 0
    %93 = vmatpush.msra.mxu0 0.0
    %94 = vmatpush.msra.mxu0 0.0
    %95 = vmatpush.msra.mxu0 0.0
    %96 = vmatpush.msra.mxu0 0.0
    %97 = vmatpush.msra.mxu0 0.0
    %98 = vmatpush.msra.mxu0 0.0
    %99 = vmatpush.msra.mxu0 0.0
    %100 = vmatpush.msra.mxu0 0.0
    %101 = vmatpush.msra.mxu0 0.0
    %102 = vmatpush.msra.mxu0 0.0
    %103 = vmatpush.msra.mxu0 0.0
    %104 = vmatpush.msra.mxu0 0.0
    %105 = vmatpush.msra.mxu0 %v84
    %106 = vmatpush.msra.mxu0 %v83
    %107 = vmatpush.msra.mxu0 %v82
    %108 = vmatpush.msra.mxu0 %v81
    %109 = vmatmul.f32.gmra.mxu0 %v91
    %v110 = vpop.f32.mrf.mxu0
    %v111 = vadd.f32 %v87, %v110
    %112 = vdwg.mxu0
    %v113 = vmul.f32 %v111, 0.5
    %v114 = vtanh.pop %v113
    %v115 = vadd.f32 %v114, 1.0
    %v116 = vmul.f32 %v115, 0.5
    %v117 = vld [vmem:[%s3] sm:$0x1]
    %v119 = vperm.slane %v117, 0
    %v121 = vmul.f32 %v116, %v119
    %v122 = vsel %vm89, %v121, 0.0
    %123 = vadd.xlane.f32.xlu0 %v122
    %v124 = vpop.xlane.xlu0 %123
    %s125 = sld [smem:[#allocation2]]
    %v126 = vstv %s125
    %v127 = vadd.f32 %v124, %v126
    %v128 = vld [vmem:[#allocation8] sm:$0xff]
    %v129 = vmul.f32 %v127, 0.5
    %v130 = vmul.f32 %v129, 1.442695
    %v131 = vpow.pop %v130
    %v132 = vmul.f32 %v128, %v131
    %v133 = vadd.f32 %v80, %v132
    %134 = vst.msk [vmem:[#allocation9] sm:$0xff] %vm89, %v133
    %135 = vst.msk [vmem:[#allocation10] sm:$0xff] %vm89, %v80
    %vm136 = vcmask 7168
    %137 = vst.msk [vmem:[%s9] sm:$0xff] %vm136, %v127
    // Predicated region
    $region42: #{tpu_custom_call.1} parent=1 // pred_check
      _
    $region43: #{tpu_custom_call.1} parent=1 // pred_check_branch
      %139 = sbr.rel (0) target = $region45
    $region44: #{tpu_custom_call.1} parent=1 // pred_region
      %141 = vsyncadd [#allocation5], 0
      %s143 = sshll.u32 [#allocation9], 4
      %s144 = int_to_ptr.vmem [resolvable:$true] %s143
      %s145 = sshll.u32 %s7, 4
      %s146 = int_to_ptr.hbm [resolvable:$true] %s145
      %148 = dma.vmem_to_hbm [thread:$0]  %s144, 128, %s146, [#allocation5]
    $region45: #{tpu_custom_call.1} parent=1 // pred_fallthru
      _
    // Predicated region
    $region46: #{tpu_custom_call.1} parent=1 // pred_check
      _
    $region47: #{tpu_custom_call.1} parent=1 // pred_check_branch
      %150 = sbr.rel (0) target = $region49
    $region48: #{tpu_custom_call.1} parent=1 // pred_region
      %152 = vsyncadd [#allocation11], 0
      %s154 = sshll.u32 [#allocation10], 4
      %s155 = int_to_ptr.vmem [resolvable:$true] %s154
      %s156 = sshll.u32 %s8, 4
      %s157 = int_to_ptr.hbm [resolvable:$true] %s156
      %159 = dma.vmem_to_hbm [thread:$0]  %s155, 128, %s157, [#allocation11]
    $region49: #{tpu_custom_call.1} parent=1 // pred_fallthru
      _
    // Predicated region
    $region50: #{tpu_custom_call.1} parent=1 // pred_check
      _
    $region51: #{tpu_custom_call.1} parent=1 // pred_check_branch
      %161 = sbr.rel (0) target = $region53
    $region52: #{tpu_custom_call.1} parent=1 // pred_region
      _
    $region53: #{tpu_custom_call.1} parent=1 // pred_fallthru
      _
    // Predicated region
    $region54: #{tpu_custom_call.1} parent=1 // pred_check
      _
    $region55: #{tpu_custom_call.1} parent=1 // pred_check_branch
      %163 = sbr.rel (0) target = $region57
    $region56: #{tpu_custom_call.1} parent=1 // pred_region
      %165 = dma.done [#allocation5], 128
    $region57: #{tpu_custom_call.1} parent=1 // pred_fallthru
      _
    // Predicated region
    $region58: #{tpu_custom_call.1} parent=1 // pred_check
      _
    $region59: #{tpu_custom_call.1} parent=1 // pred_check_branch
      %167 = sbr.rel (0) target = $region61
    $region60: #{tpu_custom_call.1} parent=1 // pred_region
      %169 = dma.done [#allocation11], 128
    $region61: #{tpu_custom_call.1} parent=1 // pred_fallthru
      _
    // Predicated region
    $region62: #{tpu_custom_call.1} parent=1 // pred_check
      _
    $region63: #{tpu_custom_call.1} parent=1 // pred_check_branch
      %171 = sbr.rel (0) target = $region65
    $region64: #{tpu_custom_call.1} parent=1 // pred_region
      _
    $region65: #{tpu_custom_call.1} parent=1 // pred_fallthru
      _
    %172 = vsyncpa [#allocation4], 1
    %173 = vsyncpa [#allocation7], 1
    %174 = vsyncpa [#allocation5], 1
    %175 = vsyncpa [#allocation11], 1

</llo_original>
